<compile_context>
chip_gen: v6e
topology: v6e:2x2x1
jax: 0.10.0
libtpu: 0.0.40
codegen_flags: <defaults>
</compile_context>

<pallas_src>
import functools

import jax
import jax.numpy as jnp
from jax.experimental import pallas as pl
from jax.experimental.pallas import tpu as pltpu

N_LAYERS = 6
D_PAD = 128  # every layer's K and N padded to 128 (lane width)


def _round_up(n, m):
    return ((n + m - 1) // m) * m


# --------------------------------------------------------------------------- kernel
def mlp_kernel(x_ref, w_ref, b_ref, o_ref, *, slope, n_layers):
    bias = b_ref[...]                       # (8, 128) f32; row k = layer-k bias (zero padded)
    z = x_ref[...]                          # (TB, 128) bf16
    for k in range(n_layers):               # static unroll
        z = jnp.dot(z, w_ref[k], preferred_element_type=jnp.float32)   # MXU, f32 acc
        z = z + bias[k:k + 1, :]                                        # full-lane f32 bias add
        if k < n_layers - 1:
            z = jnp.maximum(z, slope * z)                               # LeakyReLU (f32 VPU)
            z = z.astype(jnp.bfloat16)                                  # bf16 back to MXU
    o_ref[...] = z.astype(o_ref.dtype)


# --------------------------------------------------------------------------- params
def xavier_uniform(key, fan_in, fan_out, dtype=jnp.float32):
    # Matches torch.nn.init.xavier_uniform_ on a (out, in) weight; we emit the
    # transposed (in, out) layout directly (distribution is symmetric).
    bound = (6.0 / (fan_in + fan_out)) ** 0.5
    return jax.random.uniform(key, (fan_in, fan_out), dtype, -bound, bound)


def make_params(key, input_features=7, nc=20):
    dims = [input_features, 32, 64, 128, 128, 64, nc]
    keys = jax.random.split(key, len(dims) - 1)
    params = []
    for k, din, dout in zip(keys, dims[:-1], dims[1:]):
        w = xavier_uniform(k, din, dout)
        b = jnp.zeros((1, dout), jnp.float32)   # zeros_, kept 2D
        params.append((w, b))
    return params


def pack_params(params):
    """One-time prep (hoisted out of the forward hot path).

    Returns:
      w_stack: (6, 128, 128) bf16 -- each layer's (din, dout) weight zero-padded to 128x128.
      b_pack : (8, 128) f32      -- row k holds layer-k bias, zero padded.
    """
    assert len(params) == N_LAYERS
    w_stack = jnp.zeros((N_LAYERS, D_PAD, D_PAD), jnp.bfloat16)
    b_pack = jnp.zeros((8, D_PAD), jnp.float32)
    for k, (w, b) in enumerate(params):
        din, dout = w.shape
        w_stack = w_stack.at[k, :din, :dout].set(w.astype(jnp.bfloat16))
        b_pack = b_pack.at[k, :dout].set(b.reshape(-1).astype(jnp.float32))
    return jax.device_put(w_stack), jax.device_put(b_pack)


# --------------------------------------------------------------------------- forward
@functools.partial(jax.jit,
                   static_argnames=("nc", "slope", "tb_max", "min_grid_steps"))
def pacing_classifier_forward(x, w_stack, b_pack, *, nc=20, slope=0.02,
                              tb_max=4096, min_grid_steps=1):
    B, F = x.shape
    assert F <= D_PAD

    # Batch tile: run small/medium batches in a single grid step with only row padding
    # to a multiple of 8.  min_grid_steps=2 shards the batch across v7x's two TensorCores.
    B8 = _round_up(B, 8)
    steps = max(int(min_grid_steps), 1)
    TB = min(int(tb_max), _round_up(-(-B8 // steps), 8))
    B_pad = _round_up(B8, TB)
    grid = (B_pad // TB,)

    # Input: zero-pad (batch, feature) dims to (B_pad, 128) and cast to bf16 for the MXU.
    x_p = jnp.zeros((B_pad, D_PAD), jnp.bfloat16).at[:B, :F].set(x.astype(jnp.bfloat16))

    in_specs = [
        pl.BlockSpec((TB, D_PAD), lambda i: (i, 0)),                 # x: batch-tiled
        pl.BlockSpec((N_LAYERS, D_PAD, D_PAD), lambda i: (0, 0, 0)),  # weights: VMEM-resident
        pl.BlockSpec((8, D_PAD), lambda i: (0, 0)),                   # bias pack: resident
    ]
    out_specs = pl.BlockSpec((TB, D_PAD), lambda i: (i, 0))

    flops = 2 * B_pad * N_LAYERS * D_PAD * D_PAD
    bytes_accessed = (x_p.size * 2 + w_stack.size * 2 + b_pack.size * 4
                      + B_pad * D_PAD * 4)

    out = pl.pallas_call(
        functools.partial(mlp_kernel, slope=slope, n_layers=N_LAYERS),
        out_shape=jax.ShapeDtypeStruct((B_pad, D_PAD), jnp.float32),
        grid_spec=pltpu.PrefetchScalarGridSpec(
            num_scalar_prefetch=0,
            grid=grid,
            in_specs=in_specs,
            out_specs=out_specs,
        ),
        compiler_params=pltpu.CompilerParams(dimension_semantics=("parallel",)),
        cost_estimate=pl.CostEstimate(flops=flops, transcendentals=0,
                                      bytes_accessed=bytes_accessed),
    )(x_p, w_stack, b_pack)

    return out[:B, :nc]


# --------------------------------------------------------------------------- references
def pacing_classifier_ref_f32(x, params, slope=0.02):
    # PyTorch-fidelity reference (pure f32).
    z = x
    for i, (w, b) in enumerate(params):
        z = z @ w + b
        if i < len(params) - 1:
            z = jnp.where(z > 0, z, slope * z)
    return z


def pacing_classifier_ref_bf16(x, params, slope=0.02):
    # Numerical mirror of the kernel's dtype strategy (bf16 MXU operands, f32 accum/VPU).
    z = x.astype(jnp.bfloat16)
    for i, (w, b) in enumerate(params):
        z = jnp.dot(z, w.astype(jnp.bfloat16), preferred_element_type=jnp.float32) + b
        if i < len(params) - 1:
            z = jnp.maximum(z, slope * z).astype(jnp.bfloat16)
    return z


# --------------------------------------------------------------------------- main
if __name__ == "__main__":
    key = jax.random.PRNGKey(0)
    k_params, k_x1, k_x2 = jax.random.split(key, 3)

    F, NC = 7, 20
    params = make_params(k_params, input_features=F, nc=NC)
    w_stack, b_pack = pack_params(params)          # one-time prep, outside the hot path

    # Case 1: tiny batch (module-typical) -> single grid step, 8 rows, no padding waste.
    B1 = 8
    x1 = jax.random.normal(k_x1, (B1, F), jnp.float32)
    out1 = jax.block_until_ready(
        pacing_classifier_forward(x1, w_stack, b_pack, nc=NC))
    assert out1.shape == (B1, NC), out1.shape
    ref1_bf16 = pacing_classifier_ref_bf16(x1, params)
    ref1_f32 = pacing_classifier_ref_f32(x1, params)
    assert jnp.allclose(out1, ref1_bf16, atol=2e-3, rtol=2e-3), \
        float(jnp.max(jnp.abs(out1 - ref1_bf16)))
    assert jnp.allclose(out1, ref1_f32, atol=5e-2, rtol=5e-2), \
        float(jnp.max(jnp.abs(out1 - ref1_f32)))

    # Case 2: larger, non-multiple batch -> pads 300 -> 304 rows, still one grid step.
    B2 = 300
    x2 = jax.random.normal(k_x2, (B2, F), jnp.float32)
    out2 = jax.block_until_ready(
        pacing_classifier_forward(x2, w_stack, b_pack, nc=NC))
    assert out2.shape == (B2, NC), out2.shape
    ref2_bf16 = pacing_classifier_ref_bf16(x2, params)
    ref2_f32 = pacing_classifier_ref_f32(x2, params)
    assert jnp.allclose(out2, ref2_bf16, atol=2e-3, rtol=2e-3), \
        float(jnp.max(jnp.abs(out2 - ref2_bf16)))
    assert jnp.allclose(out2, ref2_f32, atol=5e-2, rtol=5e-2), \
        float(jnp.max(jnp.abs(out2 - ref2_f32)))

    # Case 3: same batch split into 2 grid steps (v7x dual-TensorCore path) — same numerics.
    out3 = jax.block_until_ready(
        pacing_classifier_forward(x2, w_stack, b_pack, nc=NC, min_grid_steps=2))
    assert out3.shape == (B2, NC), out3.shape
    assert jnp.allclose(out3, ref2_bf16, atol=2e-3, rtol=2e-3), \
        float(jnp.max(jnp.abs(out3 - ref2_bf16)))

    print("KERNEL_OK")
</pallas_src>

<mosaic_0001>
module attributes {stable_mosaic.version = 11 : i64} {
  func.func @mlp_kernel(%arg0: i32, %arg1: memref<8x128xbf16, #tpu.memory_space<vmem>>, %arg2: memref<6x128x128xbf16, #tpu.memory_space<vmem>>, %arg3: memref<8x128xf32, #tpu.memory_space<vmem>>, %arg4: memref<8x128xf32, #tpu.memory_space<vmem>>) attributes {dimension_semantics = [#tpu.dimension_semantics<parallel>], iteration_bounds = array<i64: 1>, scalar_prefetch = 0 : i64, scratch_operands = 0 : i64, tpu.core_type = #tpu.core_type<tc>, window_params = [{transform_indices = @transform_0, window_bounds = array<i64: 8, 128>}, {pipeline_mode = #tpu.pipeline_mode<synchronous>, transform_indices = @transform_1, window_bounds = array<i64: 6, 128, 128>}, {pipeline_mode = #tpu.pipeline_mode<synchronous>, transform_indices = @transform_2, window_bounds = array<i64: 8, 128>}, {transform_indices = @transform_3, window_bounds = array<i64: 8, 128>}]} {
    %c0 = arith.constant 0 : index
    %c0_0 = arith.constant 0 : index
    %0 = vector.load %arg3[%c0, %c0_0] : memref<8x128xf32, #tpu.memory_space<vmem>>, vector<8x128xf32>
    %c0_1 = arith.constant 0 : index
    %c0_2 = arith.constant 0 : index
    %1 = vector.load %arg1[%c0_1, %c0_2] : memref<8x128xbf16, #tpu.memory_space<vmem>>, vector<8x128xbf16>
    %c0_3 = arith.constant 0 : index
    %c0_4 = arith.constant 0 : index
    %c0_5 = arith.constant 0 : index
    %2 = vector.load %arg2[%c0_3, %c0_4, %c0_5] : memref<6x128x128xbf16, #tpu.memory_space<vmem>>, vector<1x128x128xbf16>
    %3 = vector.shape_cast %2 : vector<1x128x128xbf16> to vector<128x128xbf16>
    %cst = arith.constant dense<0.000000e+00> : vector<8x128xf32>
    %4 = tpu.matmul %1, %3, %cst {dimension_numbers = #tpu.dot_dimension_numbers<[1], [0], [0], [1], [0, 0, 1, 1], [], []>} : vector<8x128xbf16>, vector<128x128xbf16>, vector<8x128xf32> -> vector<8x128xf32>
    %5 = vector.extract_strided_slice %0 {offsets = [0, 0], sizes = [1, 128], strides = [1, 1]} : vector<8x128xf32> to vector<1x128xf32>
    %6 = vector.broadcast %5 : vector<1x128xf32> to vector<8x128xf32>
    %7 = arith.addf %4, %6 : vector<8x128xf32>
    %cst_6 = arith.constant 2.000000e-02 : f32
    %8 = vector.broadcast %cst_6 : f32 to vector<8x128xf32>
    %9 = arith.mulf %8, %7 : vector<8x128xf32>
    %10 = arith.maximumf %7, %9 : vector<8x128xf32>
    %11 = arith.truncf %10 : vector<8x128xf32> to vector<8x128xbf16>
    %c1 = arith.constant 1 : index
    %c0_7 = arith.constant 0 : index
    %c0_8 = arith.constant 0 : index
    %12 = vector.load %arg2[%c1, %c0_7, %c0_8] : memref<6x128x128xbf16, #tpu.memory_space<vmem>>, vector<1x128x128xbf16>
    %13 = vector.shape_cast %12 : vector<1x128x128xbf16> to vector<128x128xbf16>
    %cst_9 = arith.constant dense<0.000000e+00> : vector<8x128xf32>
    %14 = tpu.matmul %11, %13, %cst_9 {dimension_numbers = #tpu.dot_dimension_numbers<[1], [0], [0], [1], [0, 0, 1, 1], [], []>} : vector<8x128xbf16>, vector<128x128xbf16>, vector<8x128xf32> -> vector<8x128xf32>
    %15 = vector.extract_strided_slice %0 {offsets = [1, 0], sizes = [1, 128], strides = [1, 1]} : vector<8x128xf32> to vector<1x128xf32>
    %16 = vector.broadcast %15 : vector<1x128xf32> to vector<8x128xf32>
    %17 = arith.addf %14, %16 : vector<8x128xf32>
    %cst_10 = arith.constant 2.000000e-02 : f32
    %18 = vector.broadcast %cst_10 : f32 to vector<8x128xf32>
    %19 = arith.mulf %18, %17 : vector<8x128xf32>
    %20 = arith.maximumf %17, %19 : vector<8x128xf32>
    %21 = arith.truncf %20 : vector<8x128xf32> to vector<8x128xbf16>
    %c2 = arith.constant 2 : index
    %c0_11 = arith.constant 0 : index
    %c0_12 = arith.constant 0 : index
    %22 = vector.load %arg2[%c2, %c0_11, %c0_12] : memref<6x128x128xbf16, #tpu.memory_space<vmem>>, vector<1x128x128xbf16>
    %23 = vector.shape_cast %22 : vector<1x128x128xbf16> to vector<128x128xbf16>
    %cst_13 = arith.constant dense<0.000000e+00> : vector<8x128xf32>
    %24 = tpu.matmul %21, %23, %cst_13 {dimension_numbers = #tpu.dot_dimension_numbers<[1], [0], [0], [1], [0, 0, 1, 1], [], []>} : vector<8x128xbf16>, vector<128x128xbf16>, vector<8x128xf32> -> vector<8x128xf32>
    %25 = vector.extract_strided_slice %0 {offsets = [2, 0], sizes = [1, 128], strides = [1, 1]} : vector<8x128xf32> to vector<1x128xf32>
    %26 = vector.broadcast %25 : vector<1x128xf32> to vector<8x128xf32>
    %27 = arith.addf %24, %26 : vector<8x128xf32>
    %cst_14 = arith.constant 2.000000e-02 : f32
    %28 = vector.broadcast %cst_14 : f32 to vector<8x128xf32>
    %29 = arith.mulf %28, %27 : vector<8x128xf32>
    %30 = arith.maximumf %27, %29 : vector<8x128xf32>
    %31 = arith.truncf %30 : vector<8x128xf32> to vector<8x128xbf16>
    %c3 = arith.constant 3 : index
    %c0_15 = arith.constant 0 : index
    %c0_16 = arith.constant 0 : index
    %32 = vector.load %arg2[%c3, %c0_15, %c0_16] : memref<6x128x128xbf16, #tpu.memory_space<vmem>>, vector<1x128x128xbf16>
    %33 = vector.shape_cast %32 : vector<1x128x128xbf16> to vector<128x128xbf16>
    %cst_17 = arith.constant dense<0.000000e+00> : vector<8x128xf32>
    %34 = tpu.matmul %31, %33, %cst_17 {dimension_numbers = #tpu.dot_dimension_numbers<[1], [0], [0], [1], [0, 0, 1, 1], [], []>} : vector<8x128xbf16>, vector<128x128xbf16>, vector<8x128xf32> -> vector<8x128xf32>
    %35 = vector.extract_strided_slice %0 {offsets = [3, 0], sizes = [1, 128], strides = [1, 1]} : vector<8x128xf32> to vector<1x128xf32>
    %36 = vector.broadcast %35 : vector<1x128xf32> to vector<8x128xf32>
    %37 = arith.addf %34, %36 : vector<8x128xf32>
    %cst_18 = arith.constant 2.000000e-02 : f32
    %38 = vector.broadcast %cst_18 : f32 to vector<8x128xf32>
    %39 = arith.mulf %38, %37 : vector<8x128xf32>
    %40 = arith.maximumf %37, %39 : vector<8x128xf32>
    %41 = arith.truncf %40 : vector<8x128xf32> to vector<8x128xbf16>
    %c4 = arith.constant 4 : index
    %c0_19 = arith.constant 0 : index
    %c0_20 = arith.constant 0 : index
    %42 = vector.load %arg2[%c4, %c0_19, %c0_20] : memref<6x128x128xbf16, #tpu.memory_space<vmem>>, vector<1x128x128xbf16>
    %43 = vector.shape_cast %42 : vector<1x128x128xbf16> to vector<128x128xbf16>
    %cst_21 = arith.constant dense<0.000000e+00> : vector<8x128xf32>
    %44 = tpu.matmul %41, %43, %cst_21 {dimension_numbers = #tpu.dot_dimension_numbers<[1], [0], [0], [1], [0, 0, 1, 1], [], []>} : vector<8x128xbf16>, vector<128x128xbf16>, vector<8x128xf32> -> vector<8x128xf32>
    %45 = vector.extract_strided_slice %0 {offsets = [4, 0], sizes = [1, 128], strides = [1, 1]} : vector<8x128xf32> to vector<1x128xf32>
    %46 = vector.broadcast %45 : vector<1x128xf32> to vector<8x128xf32>
    %47 = arith.addf %44, %46 : vector<8x128xf32>
    %cst_22 = arith.constant 2.000000e-02 : f32
    %48 = vector.broadcast %cst_22 : f32 to vector<8x128xf32>
    %49 = arith.mulf %48, %47 : vector<8x128xf32>
    %50 = arith.maximumf %47, %49 : vector<8x128xf32>
    %51 = arith.truncf %50 : vector<8x128xf32> to vector<8x128xbf16>
    %c5 = arith.constant 5 : index
    %c0_23 = arith.constant 0 : index
    %c0_24 = arith.constant 0 : index
    %52 = vector.load %arg2[%c5, %c0_23, %c0_24] : memref<6x128x128xbf16, #tpu.memory_space<vmem>>, vector<1x128x128xbf16>
    %53 = vector.shape_cast %52 : vector<1x128x128xbf16> to vector<128x128xbf16>
    %cst_25 = arith.constant dense<0.000000e+00> : vector<8x128xf32>
    %54 = tpu.matmul %51, %53, %cst_25 {dimension_numbers = #tpu.dot_dimension_numbers<[1], [0], [0], [1], [0, 0, 1, 1], [], []>} : vector<8x128xbf16>, vector<128x128xbf16>, vector<8x128xf32> -> vector<8x128xf32>
    %55 = vector.extract_strided_slice %0 {offsets = [5, 0], sizes = [1, 128], strides = [1, 1]} : vector<8x128xf32> to vector<1x128xf32>
    %56 = vector.broadcast %55 : vector<1x128xf32> to vector<8x128xf32>
    %57 = arith.addf %54, %56 : vector<8x128xf32>
    %c0_26 = arith.constant 0 : index
    %c0_27 = arith.constant 0 : index
    %58 = vector.load %arg4[%c0_26, %c0_27] : memref<8x128xf32, #tpu.memory_space<vmem>>, vector<8x128xf32>
    tpu.vector_store %arg4[%c0_26, %c0_27], %57 {strides = array<i32>} : memref<8x128xf32, #tpu.memory_space<vmem>>, vector<8x128xf32>,
    return
  }
  func.func @transform_0(%arg0: i32) -> (i32, i32) {
    %c0_i32 = arith.constant 0 : i32
    %c0_i32_0 = arith.constant 0 : i32
    return %arg0, %c0_i32 : i32, i32
  }
  func.func @transform_1(%arg0: i32) -> (i32, i32, i32) {
    %c0_i32 = arith.constant 0 : i32
    %c0_i32_0 = arith.constant 0 : i32
    %c0_i32_1 = arith.constant 0 : i32
    %c0_i32_2 = arith.constant 0 : i32
    return %c0_i32, %c0_i32_0, %c0_i32_1 : i32, i32, i32
  }
  func.func @transform_2(%arg0: i32) -> (i32, i32) {
    %c0_i32 = arith.constant 0 : i32
    %c0_i32_0 = arith.constant 0 : i32
    %c0_i32_1 = arith.constant 0 : i32
    return %c0_i32, %c0_i32_0 : i32, i32
  }
  func.func @transform_3(%arg0: i32) -> (i32, i32) {
    %c0_i32 = arith.constant 0 : i32
    %c0_i32_0 = arith.constant 0 : i32
    return %arg0, %c0_i32 : i32, i32
  }
}

</mosaic_0001>

<llo_original>
// kernel: pacing_classifier_forward.1
$region0: #{pacing_classifier_forward.1}
  #allocation0 [shape = 'u32[]', space=smem, size = 0x4, offset = 0x4, fixed_abs, tag = 'smem constant byte address 0x4 - core index']
  #allocation1 [shape = 'u32[144,128]{1,0:T(1,128)}', space=vmem, size = 0x12000, scoped, tag = 'internal scratch']
  %s0 = inlined_call_operand.vmem [shape: bf16[8,128], index: 0, kind: input, shape index: {}]
  %s1 = inlined_call_operand.hbm [shape: bf16[6,128,128], index: 1, kind: input, shape index: {}]
  %s2 = inlined_call_operand.vmem [shape: f32[8,128], index: 2, kind: input, shape index: {}]
  %s3 = inlined_call_operand.hbm [shape: f32[8,128], index: 3, kind: output, shape index: {}]
  %s4 = sld [smem:[#allocation0]]
  $region26: #{pacing_classifier_forward.1} parent=0
    _
  %s6 = ssub.s32 1, %s4
  %s7 = scalar_select 0, %s6, %s4
  $region1: #{pacing_classifier_forward.1} parent=0
    #allocation2 [shape = 'u8[196608]{0}', space=vmem, size = 0x30000, scoped, tag = 'input window, operand 1, single buffered']
    #allocation3 [shape = 's32[1]{0}', space=sflag, size = 0x4, scoped, tag = 'scoped memory for pacing_classifier_forward.1']
    #allocation4 [shape = 's32[1]{0}', space=sflag, size = 0x4, scoped, tag = 'scoped memory for pacing_classifier_forward.1']
    #allocation5 [shape = 'u8[4096]{0}', space=vmem, size = 0x1000, scoped, tag = 'output window, operand 0, single buffered']
    %8 = vsyncpa [#allocation3], 0
    %9 = vsyncpa [#allocation4], 0
    // Predicated region
    $region2: #{pacing_classifier_forward.1} parent=1 // pred_check
      _
    $region3: #{pacing_classifier_forward.1} parent=1 // pred_check_branch
      %11 = sbr.rel (0) target = $region5
    $region4: #{pacing_classifier_forward.1} parent=1 // pred_region
      _
    $region5: #{pacing_classifier_forward.1} parent=1 // pred_fallthru
      _
    // Predicated region
    $region6: #{pacing_classifier_forward.1} parent=1 // pred_check
      _
    $region7: #{pacing_classifier_forward.1} parent=1 // pred_check_branch
      %13 = sbr.rel (0) target = $region9
    $region8: #{pacing_classifier_forward.1} parent=1 // pred_region
      %s15 = ssub.s32 6144, 6144
      %16 = vsyncadd [#allocation3], %s15
      %s17 = sshll.u32 [#allocation2], 4
      %s18 = int_to_ptr.vmem [resolvable:$true] %s17
      %23 = dma.hbm_to_vmem [thread:$0]  %s1, 6144, %s18, [#allocation3], 64, 64, 4
    $region9: #{pacing_classifier_forward.1} parent=1 // pred_fallthru
      _
    // Predicated region
    $region10: #{pacing_classifier_forward.1} parent=1 // pred_check
      _
    $region11: #{pacing_classifier_forward.1} parent=1 // pred_check_branch
      %25 = sbr.rel (0) target = $region13
    $region12: #{pacing_classifier_forward.1} parent=1 // pred_region
      _
    $region13: #{pacing_classifier_forward.1} parent=1 // pred_fallthru
      _
    // Predicated region
    $region14: #{pacing_classifier_forward.1} parent=1 // pred_check
      _
    $region15: #{pacing_classifier_forward.1} parent=1 // pred_check_branch
      %27 = sbr.rel (0) target = $region17
    $region16: #{pacing_classifier_forward.1} parent=1 // pred_region
      %28 = dma.done [#allocation3], 6144
    $region17: #{pacing_classifier_forward.1} parent=1 // pred_fallthru
      _
    %v30 = vld [vmem:[%s2] sm:$0xff]
    %v31 = vld [vmem:[%s0] sm:$0xf]
    %v32 = vld [vmem:[#allocation2] sm:$0xf]
    %v33 = vld [vmem:[#allocation2 + $0x4] sm:$0xf]
    %v34 = vld [vmem:[#allocation2 + $0x8] sm:$0xf]
    %v35 = vld [vmem:[#allocation2 + $0xc] sm:$0xf]
    %v36 = vld [vmem:[#allocation2 + $0x10] sm:$0xf]
    %v37 = vld [vmem:[#allocation2 + $0x14] sm:$0xf]
    %v38 = vld [vmem:[#allocation2 + $0x18] sm:$0xf]
    %v39 = vld [vmem:[#allocation2 + $0x1c] sm:$0xf]
    %v40 = vld [vmem:[#allocation2 + $0x20] sm:$0xf]
    %v41 = vld [vmem:[#allocation2 + $0x24] sm:$0xf]
    %v42 = vld [vmem:[#allocation2 + $0x28] sm:$0xf]
    %v43 = vld [vmem:[#allocation2 + $0x2c] sm:$0xf]
    %v44 = vld [vmem:[#allocation2 + $0x30] sm:$0xf]
    %v45 = vld [vmem:[#allocation2 + $0x34] sm:$0xf]
    %v46 = vld [vmem:[#allocation2 + $0x38] sm:$0xf]
    %v47 = vld [vmem:[#allocation2 + $0x3c] sm:$0xf]
    %v48 = vlaneseq
    %v49 = vshrl.u32 %v48, 7
    %v50 = vsub.s32 0, %v49
    %v51 = vrot.slane %v30, %v50
    %v68 = vunpack.c.l.b16 %v32
    %v69 = vunpack.c.l.b16 %v33
    %v70 = vunpack.c.l.b16 %v34
    %v71 = vunpack.c.l.b16 %v35
    %v72 = vunpack.c.l.b16 %v36
    %v73 = vunpack.c.l.b16 %v37
    %v74 = vunpack.c.l.b16 %v38
    %v75 = vunpack.c.l.b16 %v39
    %v76 = vunpack.c.l.b16 %v40
    %v77 = vunpack.c.l.b16 %v41
    %v78 = vunpack.c.l.b16 %v42
    %v79 = vunpack.c.l.b16 %v43
    %v80 = vunpack.c.l.b16 %v44
    %v81 = vunpack.c.l.b16 %v45
    %v82 = vunpack.c.l.b16 %v46
    %v83 = vunpack.c.l.b16 %v47
    %v84 = vpack.c.b16 %v69, %v68
    %v85 = vpack.c.b16 %v71, %v70
    %v86 = vpack.c.b16 %v73, %v72
    %v87 = vpack.c.b16 %v75, %v74
    %v88 = vpack.c.b16 %v77, %v76
    %v89 = vpack.c.b16 %v79, %v78
    %v90 = vpack.c.b16 %v81, %v80
    %v91 = vpack.c.b16 %v83, %v82
    %100 = vmatprep.subr.bf16.mxu0 0
    %101 = vmatpush1.bf16.msra.mxu0 %v91
    %102 = vmatprep.subr.bf16.mxu0 0
    %103 = vmatpush1.bf16.msra.mxu0 %v90
    %104 = vmatprep.subr.bf16.mxu0 0
    %105 = vmatpush1.bf16.msra.mxu0 %v89
    %106 = vmatprep.subr.bf16.mxu0 0
    %107 = vmatpush1.bf16.msra.mxu0 %v88
    %108 = vmatprep.subr.bf16.mxu0 0
    %109 = vmatpush1.bf16.msra.mxu0 %v87
    %110 = vmatprep.subr.bf16.mxu0 0
    %111 = vmatpush1.bf16.msra.mxu0 %v86
    %112 = vmatprep.subr.bf16.mxu0 0
    %113 = vmatpush1.bf16.msra.mxu0 %v85
    %114 = vmatprep.subr.bf16.mxu0 0
    %115 = vmatpush1.bf16.msra.mxu0 %v84
    %116 = vmatprep.subr.bf16.mxu0 0
    %117 = vmatpush2.bf16.msra.mxu0 0
    %118 = vmatprep.subr.bf16.mxu0 0
    %119 = vmatpush2.bf16.msra.mxu0 0
    %120 = vmatprep.subr.bf16.mxu0 0
    %121 = vmatpush2.bf16.msra.mxu0 0
    %122 = vmatprep.subr.bf16.mxu0 0
    %123 = vmatpush2.bf16.msra.mxu0 0
    %124 = vmatprep.subr.bf16.mxu0 0
    %125 = vmatpush2.bf16.msra.mxu0 0
    %126 = vmatprep.subr.bf16.mxu0 0
    %127 = vmatpush2.bf16.msra.mxu0 0
    %128 = vmatprep.subr.bf16.mxu0 0
    %129 = vmatpush2.bf16.msra.mxu0 0
    %130 = vmatprep.subr.bf16.mxu0 0
    %131 = vmatpush2.bf16.msra.mxu0 0
    %132 = vmatprep.mubr.bf16.mxu0 0
    %133 = vmatmul.mubr.bf16.gmra.mxu0 %v31
    %v134 = vpop.f32.mrf.mxu0
    %v135 = vadd.f32 %v51, %v134
    %v136 = vpop.f32.mrf.mxu0
    %v137 = vpop.f32.mrf.mxu0
    %v138 = vpop.f32.mrf.mxu0
    %139 = vdwg.mxu0
    %v140 = vmul.f32 %v135, 0.02
    %v141 = vmax.f32 %v135, %v140
    %v142 = vpack.c.bf16 %v141, %v141
    %s143 = scalar_lea.vmem [#allocation2], 64
    %v144 = vld [vmem:[%s143] sm:$0xf]
    %v145 = vld [vmem:[%s143 + $0x4] sm:$0xf]
    %v146 = vld [vmem:[%s143 + $0x8] sm:$0xf]
    %v147 = vld [vmem:[%s143 + $0xc] sm:$0xf]
    %v148 = vld [vmem:[%s143 + $0x10] sm:$0xf]
    %v149 = vld [vmem:[%s143 + $0x14] sm:$0xf]
    %v150 = vld [vmem:[%s143 + $0x18] sm:$0xf]
    %v151 = vld [vmem:[%s143 + $0x1c] sm:$0xf]
    %v152 = vld [vmem:[%s143 + $0x20] sm:$0xf]
    %v153 = vld [vmem:[%s143 + $0x24] sm:$0xf]
    %v154 = vld [vmem:[%s143 + $0x28] sm:$0xf]
    %v155 = vld [vmem:[%s143 + $0x2c] sm:$0xf]
    %v156 = vld [vmem:[%s143 + $0x30] sm:$0xf]
    %v157 = vld [vmem:[%s143 + $0x34] sm:$0xf]
    %v158 = vld [vmem:[%s143 + $0x38] sm:$0xf]
    %v159 = vld [vmem:[%s143 + $0x3c] sm:$0xf]
    %v160 = vlaneseq
    %v161 = vshrl.u32 %v160, 7
    %v162 = vsub.s32 1, %v161
    %v163 = vrot.slane %v30, %v162
    %v180 = vunpack.c.l.b16 %v144
    %v181 = vunpack.c.l.b16 %v145
    %v182 = vunpack.c.l.b16 %v146
    %v183 = vunpack.c.l.b16 %v147
    %v184 = vunpack.c.l.b16 %v148
    %v185 = vunpack.c.l.b16 %v149
    %v186 = vunpack.c.l.b16 %v150
    %v187 = vunpack.c.l.b16 %v151
    %v188 = vunpack.c.l.b16 %v152
    %v189 = vunpack.c.l.b16 %v153
    %v190 = vunpack.c.l.b16 %v154
    %v191 = vunpack.c.l.b16 %v155
    %v192 = vunpack.c.l.b16 %v156
    %v193 = vunpack.c.l.b16 %v157
    %v194 = vunpack.c.l.b16 %v158
    %v195 = vunpack.c.l.b16 %v159
    %v196 = vpack.c.b16 %v181, %v180
    %v197 = vpack.c.b16 %v183, %v182
    %v198 = vpack.c.b16 %v185, %v184
    %v199 = vpack.c.b16 %v187, %v186
    %v200 = vpack.c.b16 %v189, %v188
    %v201 = vpack.c.b16 %v191, %v190
    %v202 = vpack.c.b16 %v193, %v192
    %v203 = vpack.c.b16 %v195, %v194
    %212 = vmatprep.subr.bf16.mxu0 0
    %213 = vmatpush1.bf16.msra.mxu0 %v203
    %214 = vmatprep.subr.bf16.mxu0 0
    %215 = vmatpush1.bf16.msra.mxu0 %v202
    %216 = vmatprep.subr.bf16.mxu0 0
    %217 = vmatpush1.bf16.msra.mxu0 %v201
    %218 = vmatprep.subr.bf16.mxu0 0
    %219 = vmatpush1.bf16.msra.mxu0 %v200
    %220 = vmatprep.subr.bf16.mxu0 0
    %221 = vmatpush1.bf16.msra.mxu0 %v199
    %222 = vmatprep.subr.bf16.mxu0 0
    %223 = vmatpush1.bf16.msra.mxu0 %v198
    %224 = vmatprep.subr.bf16.mxu0 0
    %225 = vmatpush1.bf16.msra.mxu0 %v197
    %226 = vmatprep.subr.bf16.mxu0 0
    %227 = vmatpush1.bf16.msra.mxu0 %v196
    %228 = vmatprep.subr.bf16.mxu0 0
    %229 = vmatpush2.bf16.msra.mxu0 0
    %230 = vmatprep.subr.bf16.mxu0 0
    %231 = vmatpush2.bf16.msra.mxu0 0
    %232 = vmatprep.subr.bf16.mxu0 0
    %233 = vmatpush2.bf16.msra.mxu0 0
    %234 = vmatprep.subr.bf16.mxu0 0
    %235 = vmatpush2.bf16.msra.mxu0 0
    %236 = vmatprep.subr.bf16.mxu0 0
    %237 = vmatpush2.bf16.msra.mxu0 0
    %238 = vmatprep.subr.bf16.mxu0 0
    %239 = vmatpush2.bf16.msra.mxu0 0
    %240 = vmatprep.subr.bf16.mxu0 0
    %241 = vmatpush2.bf16.msra.mxu0 0
    %242 = vmatprep.subr.bf16.mxu0 0
    %243 = vmatpush2.bf16.msra.mxu0 0
    %244 = vmatprep.mubr.bf16.mxu0 0
    %245 = vmatmul.mubr.bf16.gmra.mxu0 %v142
    %v246 = vpop.f32.mrf.mxu0
    %v247 = vadd.f32 %v163, %v246
    %v248 = vpop.f32.mrf.mxu0
    %v249 = vpop.f32.mrf.mxu0
    %v250 = vpop.f32.mrf.mxu0
    %251 = vdwg.mxu0
    %v252 = vmul.f32 %v247, 0.02
    %v253 = vmax.f32 %v247, %v252
    %v254 = vpack.c.bf16 %v253, %v253
    %s255 = scalar_lea.vmem [#allocation2], 128
    %v256 = vld [vmem:[%s255] sm:$0xf]
    %v257 = vld [vmem:[%s255 + $0x4] sm:$0xf]
    %v258 = vld [vmem:[%s255 + $0x8] sm:$0xf]
    %v259 = vld [vmem:[%s255 + $0xc] sm:$0xf]
    %v260 = vld [vmem:[%s255 + $0x10] sm:$0xf]
    %v261 = vld [vmem:[%s255 + $0x14] sm:$0xf]
    %v262 = vld [vmem:[%s255 + $0x18] sm:$0xf]
    %v263 = vld [vmem:[%s255 + $0x1c] sm:$0xf]
    %v264 = vld [vmem:[%s255 + $0x20] sm:$0xf]
    %v265 = vld [vmem:[%s255 + $0x24] sm:$0xf]
    %v266 = vld [vmem:[%s255 + $0x28] sm:$0xf]
    %v267 = vld [vmem:[%s255 + $0x2c] sm:$0xf]
    %v268 = vld [vmem:[%s255 + $0x30] sm:$0xf]
    %v269 = vld [vmem:[%s255 + $0x34] sm:$0xf]
    %v270 = vld [vmem:[%s255 + $0x38] sm:$0xf]
    %v271 = vld [vmem:[%s255 + $0x3c] sm:$0xf]
    %v272 = vlaneseq
    %v273 = vshrl.u32 %v272, 7
    %v274 = vsub.s32 2, %v273
    %v275 = vrot.slane %v30, %v274
    %v292 = vunpack.c.l.b16 %v256
    %v293 = vunpack.c.l.b16 %v257
    %v294 = vunpack.c.l.b16 %v258
    %v295 = vunpack.c.l.b16 %v259
    %v296 = vunpack.c.l.b16 %v260
    %v297 = vunpack.c.l.b16 %v261
    %v298 = vunpack.c.l.b16 %v262
    %v299 = vunpack.c.l.b16 %v263
    %v300 = vunpack.c.l.b16 %v264
    %v301 = vunpack.c.l.b16 %v265
    %v302 = vunpack.c.l.b16 %v266
    %v303 = vunpack.c.l.b16 %v267
    %v304 = vunpack.c.l.b16 %v268
    %v305 = vunpack.c.l.b16 %v269
    %v306 = vunpack.c.l.b16 %v270
    %v307 = vunpack.c.l.b16 %v271
    %v308 = vpack.c.b16 %v293, %v292
    %v309 = vpack.c.b16 %v295, %v294
    %v310 = vpack.c.b16 %v297, %v296
    %v311 = vpack.c.b16 %v299, %v298
    %v312 = vpack.c.b16 %v301, %v300
    %v313 = vpack.c.b16 %v303, %v302
    %v314 = vpack.c.b16 %v305, %v304
    %v315 = vpack.c.b16 %v307, %v306
    %324 = vmatprep.subr.bf16.mxu0 0
    %325 = vmatpush1.bf16.msra.mxu0 %v315
    %326 = vmatprep.subr.bf16.mxu0 0
    %327 = vmatpush1.bf16.msra.mxu0 %v314
    %328 = vmatprep.subr.bf16.mxu0 0
    %329 = vmatpush1.bf16.msra.mxu0 %v313
    %330 = vmatprep.subr.bf16.mxu0 0
    %331 = vmatpush1.bf16.msra.mxu0 %v312
    %332 = vmatprep.subr.bf16.mxu0 0
    %333 = vmatpush1.bf16.msra.mxu0 %v311
    %334 = vmatprep.subr.bf16.mxu0 0
    %335 = vmatpush1.bf16.msra.mxu0 %v310
    %336 = vmatprep.subr.bf16.mxu0 0
    %337 = vmatpush1.bf16.msra.mxu0 %v309
    %338 = vmatprep.subr.bf16.mxu0 0
    %339 = vmatpush1.bf16.msra.mxu0 %v308
    %340 = vmatprep.subr.bf16.mxu0 0
    %341 = vmatpush2.bf16.msra.mxu0 0
    %342 = vmatprep.subr.bf16.mxu0 0
    %343 = vmatpush2.bf16.msra.mxu0 0
    %344 = vmatprep.subr.bf16.mxu0 0
    %345 = vmatpush2.bf16.msra.mxu0 0
    %346 = vmatprep.subr.bf16.mxu0 0
    %347 = vmatpush2.bf16.msra.mxu0 0
    %348 = vmatprep.subr.bf16.mxu0 0
    %349 = vmatpush2.bf16.msra.mxu0 0
    %350 = vmatprep.subr.bf16.mxu0 0
    %351 = vmatpush2.bf16.msra.mxu0 0
    %352 = vmatprep.subr.bf16.mxu0 0
    %353 = vmatpush2.bf16.msra.mxu0 0
    %354 = vmatprep.subr.bf16.mxu0 0
    %355 = vmatpush2.bf16.msra.mxu0 0
    %356 = vmatprep.mubr.bf16.mxu0 0
    %357 = vmatmul.mubr.bf16.gmra.mxu0 %v254
    %v358 = vpop.f32.mrf.mxu0
    %v359 = vadd.f32 %v275, %v358
    %v360 = vpop.f32.mrf.mxu0
    %v361 = vpop.f32.mrf.mxu0
    %v362 = vpop.f32.mrf.mxu0
    %363 = vdwg.mxu0
    %v364 = vmul.f32 %v359, 0.02
    %v365 = vmax.f32 %v359, %v364
    %v366 = vpack.c.bf16 %v365, %v365
    %s367 = scalar_lea.vmem [#allocation2], 192
    %v368 = vld [vmem:[%s367] sm:$0xf]
    %v369 = vld [vmem:[%s367 + $0x4] sm:$0xf]
    %v370 = vld [vmem:[%s367 + $0x8] sm:$0xf]
    %v371 = vld [vmem:[%s367 + $0xc] sm:$0xf]
    %v372 = vld [vmem:[%s367 + $0x10] sm:$0xf]
    %v373 = vld [vmem:[%s367 + $0x14] sm:$0xf]
    %v374 = vld [vmem:[%s367 + $0x18] sm:$0xf]
    %v375 = vld [vmem:[%s367 + $0x1c] sm:$0xf]
    %v376 = vld [vmem:[%s367 + $0x20] sm:$0xf]
    %v377 = vld [vmem:[%s367 + $0x24] sm:$0xf]
    %v378 = vld [vmem:[%s367 + $0x28] sm:$0xf]
    %v379 = vld [vmem:[%s367 + $0x2c] sm:$0xf]
    %v380 = vld [vmem:[%s367 + $0x30] sm:$0xf]
    %v381 = vld [vmem:[%s367 + $0x34] sm:$0xf]
    %v382 = vld [vmem:[%s367 + $0x38] sm:$0xf]
    %v383 = vld [vmem:[%s367 + $0x3c] sm:$0xf]
    %v384 = vlaneseq
    %v385 = vshrl.u32 %v384, 7
    %v386 = vsub.s32 3, %v385
    %v387 = vrot.slane %v30, %v386
    %v404 = vunpack.c.l.b16 %v368
    %v405 = vunpack.c.l.b16 %v369
    %v406 = vunpack.c.l.b16 %v370
    %v407 = vunpack.c.l.b16 %v371
    %v408 = vunpack.c.l.b16 %v372
    %v409 = vunpack.c.l.b16 %v373
    %v410 = vunpack.c.l.b16 %v374
    %v411 = vunpack.c.l.b16 %v375
    %v412 = vunpack.c.l.b16 %v376
    %v413 = vunpack.c.l.b16 %v377
    %v414 = vunpack.c.l.b16 %v378
    %v415 = vunpack.c.l.b16 %v379
    %v416 = vunpack.c.l.b16 %v380
    %v417 = vunpack.c.l.b16 %v381
    %v418 = vunpack.c.l.b16 %v382
    %v419 = vunpack.c.l.b16 %v383
    %v420 = vpack.c.b16 %v405, %v404
    %v421 = vpack.c.b16 %v407, %v406
    %v422 = vpack.c.b16 %v409, %v408
    %v423 = vpack.c.b16 %v411, %v410
    %v424 = vpack.c.b16 %v413, %v412
    %v425 = vpack.c.b16 %v415, %v414
    %v426 = vpack.c.b16 %v417, %v416
    %v427 = vpack.c.b16 %v419, %v418
    %436 = vmatprep.subr.bf16.mxu0 0
    %437 = vmatpush1.bf16.msra.mxu0 %v427
    %438 = vmatprep.subr.bf16.mxu0 0
    %439 = vmatpush1.bf16.msra.mxu0 %v426
    %440 = vmatprep.subr.bf16.mxu0 0
    %441 = vmatpush1.bf16.msra.mxu0 %v425
    %442 = vmatprep.subr.bf16.mxu0 0
    %443 = vmatpush1.bf16.msra.mxu0 %v424
    %444 = vmatprep.subr.bf16.mxu0 0
    %445 = vmatpush1.bf16.msra.mxu0 %v423
    %446 = vmatprep.subr.bf16.mxu0 0
    %447 = vmatpush1.bf16.msra.mxu0 %v422
    %448 = vmatprep.subr.bf16.mxu0 0
    %449 = vmatpush1.bf16.msra.mxu0 %v421
    %450 = vmatprep.subr.bf16.mxu0 0
    %451 = vmatpush1.bf16.msra.mxu0 %v420
    %452 = vmatprep.subr.bf16.mxu0 0
    %453 = vmatpush2.bf16.msra.mxu0 0
    %454 = vmatprep.subr.bf16.mxu0 0
    %455 = vmatpush2.bf16.msra.mxu0 0
    %456 = vmatprep.subr.bf16.mxu0 0
    %457 = vmatpush2.bf16.msra.mxu0 0
    %458 = vmatprep.subr.bf16.mxu0 0
    %459 = vmatpush2.bf16.msra.mxu0 0
    %460 = vmatprep.subr.bf16.mxu0 0
    %461 = vmatpush2.bf16.msra.mxu0 0
    %462 = vmatprep.subr.bf16.mxu0 0
    %463 = vmatpush2.bf16.msra.mxu0 0
    %464 = vmatprep.subr.bf16.mxu0 0
    %465 = vmatpush2.bf16.msra.mxu0 0
    %466 = vmatprep.subr.bf16.mxu0 0
    %467 = vmatpush2.bf16.msra.mxu0 0
    %468 = vmatprep.mubr.bf16.mxu0 0
    %469 = vmatmul.mubr.bf16.gmra.mxu0 %v366
    %v470 = vpop.f32.mrf.mxu0
    %v471 = vadd.f32 %v387, %v470
    %v472 = vpop.f32.mrf.mxu0
    %v473 = vpop.f32.mrf.mxu0
    %v474 = vpop.f32.mrf.mxu0
    %475 = vdwg.mxu0
    %v476 = vmul.f32 %v471, 0.02
    %v477 = vmax.f32 %v471, %v476
    %v478 = vpack.c.bf16 %v477, %v477
    %s479 = scalar_lea.vmem [#allocation2], 256
    %v480 = vld [vmem:[%s479] sm:$0xf]
    %v481 = vld [vmem:[%s479 + $0x4] sm:$0xf]
    %v482 = vld [vmem:[%s479 + $0x8] sm:$0xf]
    %v483 = vld [vmem:[%s479 + $0xc] sm:$0xf]
    %v484 = vld [vmem:[%s479 + $0x10] sm:$0xf]
    %v485 = vld [vmem:[%s479 + $0x14] sm:$0xf]
    %v486 = vld [vmem:[%s479 + $0x18] sm:$0xf]
    %v487 = vld [vmem:[%s479 + $0x1c] sm:$0xf]
    %v488 = vld [vmem:[%s479 + $0x20] sm:$0xf]
    %v489 = vld [vmem:[%s479 + $0x24] sm:$0xf]
    %v490 = vld [vmem:[%s479 + $0x28] sm:$0xf]
    %v491 = vld [vmem:[%s479 + $0x2c] sm:$0xf]
    %v492 = vld [vmem:[%s479 + $0x30] sm:$0xf]
    %v493 = vld [vmem:[%s479 + $0x34] sm:$0xf]
    %v494 = vld [vmem:[%s479 + $0x38] sm:$0xf]
    %v495 = vld [vmem:[%s479 + $0x3c] sm:$0xf]
    %v496 = vlaneseq
    %v497 = vshrl.u32 %v496, 7
    %v498 = vsub.s32 4, %v497
    %v499 = vrot.slane %v30, %v498
    %v516 = vunpack.c.l.b16 %v480
    %v517 = vunpack.c.l.b16 %v481
    %v518 = vunpack.c.l.b16 %v482
    %v519 = vunpack.c.l.b16 %v483
    %v520 = vunpack.c.l.b16 %v484
    %v521 = vunpack.c.l.b16 %v485
    %v522 = vunpack.c.l.b16 %v486
    %v523 = vunpack.c.l.b16 %v487
    %v524 = vunpack.c.l.b16 %v488
    %v525 = vunpack.c.l.b16 %v489
    %v526 = vunpack.c.l.b16 %v490
    %v527 = vunpack.c.l.b16 %v491
    %v528 = vunpack.c.l.b16 %v492
    %v529 = vunpack.c.l.b16 %v493
    %v530 = vunpack.c.l.b16 %v494
    %v531 = vunpack.c.l.b16 %v495
    %v532 = vpack.c.b16 %v517, %v516
    %v533 = vpack.c.b16 %v519, %v518
    %v534 = vpack.c.b16 %v521, %v520
    %v535 = vpack.c.b16 %v523, %v522
    %v536 = vpack.c.b16 %v525, %v524
    %v537 = vpack.c.b16 %v527, %v526
    %v538 = vpack.c.b16 %v529, %v528
    %v539 = vpack.c.b16 %v531, %v530
    %548 = vmatprep.subr.bf16.mxu0 0
    %549 = vmatpush1.bf16.msra.mxu0 %v539
    %550 = vmatprep.subr.bf16.mxu0 0
    %551 = vmatpush1.bf16.msra.mxu0 %v538
    %552 = vmatprep.subr.bf16.mxu0 0
    %553 = vmatpush1.bf16.msra.mxu0 %v537
    %554 = vmatprep.subr.bf16.mxu0 0
    %555 = vmatpush1.bf16.msra.mxu0 %v536
    %556 = vmatprep.subr.bf16.mxu0 0
    %557 = vmatpush1.bf16.msra.mxu0 %v535
    %558 = vmatprep.subr.bf16.mxu0 0
    %559 = vmatpush1.bf16.msra.mxu0 %v534
    %560 = vmatprep.subr.bf16.mxu0 0
    %561 = vmatpush1.bf16.msra.mxu0 %v533
    %562 = vmatprep.subr.bf16.mxu0 0
    %563 = vmatpush1.bf16.msra.mxu0 %v532
    %564 = vmatprep.subr.bf16.mxu0 0
    %565 = vmatpush2.bf16.msra.mxu0 0
    %566 = vmatprep.subr.bf16.mxu0 0
    %567 = vmatpush2.bf16.msra.mxu0 0
    %568 = vmatprep.subr.bf16.mxu0 0
    %569 = vmatpush2.bf16.msra.mxu0 0
    %570 = vmatprep.subr.bf16.mxu0 0
    %571 = vmatpush2.bf16.msra.mxu0 0
    %572 = vmatprep.subr.bf16.mxu0 0
    %573 = vmatpush2.bf16.msra.mxu0 0
    %574 = vmatprep.subr.bf16.mxu0 0
    %575 = vmatpush2.bf16.msra.mxu0 0
    %576 = vmatprep.subr.bf16.mxu0 0
    %577 = vmatpush2.bf16.msra.mxu0 0
    %578 = vmatprep.subr.bf16.mxu0 0
    %579 = vmatpush2.bf16.msra.mxu0 0
    %580 = vmatprep.mubr.bf16.mxu0 0
    %581 = vmatmul.mubr.bf16.gmra.mxu0 %v478
    %v582 = vpop.f32.mrf.mxu0
    %v583 = vadd.f32 %v499, %v582
    %v584 = vpop.f32.mrf.mxu0
    %v585 = vpop.f32.mrf.mxu0
    %v586 = vpop.f32.mrf.mxu0
    %587 = vdwg.mxu0
    %v588 = vmul.f32 %v583, 0.02
    %v589 = vmax.f32 %v583, %v588
    %v590 = vpack.c.bf16 %v589, %v589
    %s591 = scalar_lea.vmem [#allocation2], 320
    %v592 = vld [vmem:[%s591] sm:$0xf]
    %v593 = vld [vmem:[%s591 + $0x4] sm:$0xf]
    %v594 = vld [vmem:[%s591 + $0x8] sm:$0xf]
    %v595 = vld [vmem:[%s591 + $0xc] sm:$0xf]
    %v596 = vld [vmem:[%s591 + $0x10] sm:$0xf]
    %v597 = vld [vmem:[%s591 + $0x14] sm:$0xf]
    %v598 = vld [vmem:[%s591 + $0x18] sm:$0xf]
    %v599 = vld [vmem:[%s591 + $0x1c] sm:$0xf]
    %v600 = vld [vmem:[%s591 + $0x20] sm:$0xf]
    %v601 = vld [vmem:[%s591 + $0x24] sm:$0xf]
    %v602 = vld [vmem:[%s591 + $0x28] sm:$0xf]
    %v603 = vld [vmem:[%s591 + $0x2c] sm:$0xf]
    %v604 = vld [vmem:[%s591 + $0x30] sm:$0xf]
    %v605 = vld [vmem:[%s591 + $0x34] sm:$0xf]
    %v606 = vld [vmem:[%s591 + $0x38] sm:$0xf]
    %v607 = vld [vmem:[%s591 + $0x3c] sm:$0xf]
    %v608 = vlaneseq
    %v609 = vshrl.u32 %v608, 7
    %v610 = vsub.s32 5, %v609
    %v611 = vrot.slane %v30, %v610
    %v628 = vunpack.c.l.b16 %v592
    %v629 = vunpack.c.l.b16 %v593
    %v630 = vunpack.c.l.b16 %v594
    %v631 = vunpack.c.l.b16 %v595
    %v632 = vunpack.c.l.b16 %v596
    %v633 = vunpack.c.l.b16 %v597
    %v634 = vunpack.c.l.b16 %v598
    %v635 = vunpack.c.l.b16 %v599
    %v636 = vunpack.c.l.b16 %v600
    %v637 = vunpack.c.l.b16 %v601
    %v638 = vunpack.c.l.b16 %v602
    %v639 = vunpack.c.l.b16 %v603
    %v640 = vunpack.c.l.b16 %v604
    %v641 = vunpack.c.l.b16 %v605
    %v642 = vunpack.c.l.b16 %v606
    %v643 = vunpack.c.l.b16 %v607
    %v644 = vpack.c.b16 %v629, %v628
    %v645 = vpack.c.b16 %v631, %v630
    %v646 = vpack.c.b16 %v633, %v632
    %v647 = vpack.c.b16 %v635, %v634
    %v648 = vpack.c.b16 %v637, %v636
    %v649 = vpack.c.b16 %v639, %v638
    %v650 = vpack.c.b16 %v641, %v640
    %v651 = vpack.c.b16 %v643, %v642
    %660 = vmatprep.subr.bf16.mxu0 0
    %661 = vmatpush1.bf16.msra.mxu0 %v651
    %662 = vmatprep.subr.bf16.mxu0 0
    %663 = vmatpush1.bf16.msra.mxu0 %v650
    %664 = vmatprep.subr.bf16.mxu0 0
    %665 = vmatpush1.bf16.msra.mxu0 %v649
    %666 = vmatprep.subr.bf16.mxu0 0
    %667 = vmatpush1.bf16.msra.mxu0 %v648
    %668 = vmatprep.subr.bf16.mxu0 0
    %669 = vmatpush1.bf16.msra.mxu0 %v647
    %670 = vmatprep.subr.bf16.mxu0 0
    %671 = vmatpush1.bf16.msra.mxu0 %v646
    %672 = vmatprep.subr.bf16.mxu0 0
    %673 = vmatpush1.bf16.msra.mxu0 %v645
    %674 = vmatprep.subr.bf16.mxu0 0
    %675 = vmatpush1.bf16.msra.mxu0 %v644
    %676 = vmatprep.subr.bf16.mxu0 0
    %677 = vmatpush2.bf16.msra.mxu0 0
    %678 = vmatprep.subr.bf16.mxu0 0
    %679 = vmatpush2.bf16.msra.mxu0 0
    %680 = vmatprep.subr.bf16.mxu0 0
    %681 = vmatpush2.bf16.msra.mxu0 0
    %682 = vmatprep.subr.bf16.mxu0 0
    %683 = vmatpush2.bf16.msra.mxu0 0
    %684 = vmatprep.subr.bf16.mxu0 0
    %685 = vmatpush2.bf16.msra.mxu0 0
    %686 = vmatprep.subr.bf16.mxu0 0
    %687 = vmatpush2.bf16.msra.mxu0 0
    %688 = vmatprep.subr.bf16.mxu0 0
    %689 = vmatpush2.bf16.msra.mxu0 0
    %690 = vmatprep.subr.bf16.mxu0 0
    %691 = vmatpush2.bf16.msra.mxu0 0
    %692 = vmatprep.mubr.bf16.mxu0 0
    %693 = vmatmul.mubr.bf16.gmra.mxu0 %v590
    %v694 = vpop.f32.mrf.mxu0
    %v695 = vadd.f32 %v611, %v694
    %v696 = vpop.f32.mrf.mxu0
    %v697 = vpop.f32.mrf.mxu0
    %v698 = vpop.f32.mrf.mxu0
    %699 = vdwg.mxu0
    %700 = vst [vmem:[#allocation5] sm:$0xff] %v695
    // Predicated region
    $region18: #{pacing_classifier_forward.1} parent=1 // pred_check
      _
    $region19: #{pacing_classifier_forward.1} parent=1 // pred_check_branch
      %702 = sbr.rel (0) target = $region21
    $region20: #{pacing_classifier_forward.1} parent=1 // pred_region
      %s704 = ssub.s32 128, 128
      %705 = vsyncadd [#allocation4], %s704
      %s707 = sshll.u32 [#allocation5], 4
      %s708 = int_to_ptr.vmem [resolvable:$true] %s707
      %710 = dma.vmem_to_hbm [thread:$0]  %s708, 128, %s3, [#allocation4]
    $region21: #{pacing_classifier_forward.1} parent=1 // pred_fallthru
      _
    // Predicated region
    $region22: #{pacing_classifier_forward.1} parent=1 // pred_check
      _
    $region23: #{pacing_classifier_forward.1} parent=1 // pred_check_branch
      %712 = sbr.rel (0) target = $region25
    $region24: #{pacing_classifier_forward.1} parent=1 // pred_region
      %713 = dma.done [#allocation4], 128
    $region25: #{pacing_classifier_forward.1} parent=1 // pred_fallthru
      _
    %714 = vsyncpa [#allocation3], 1
    %715 = vsyncpa [#allocation4], 1

</llo_original>
